<compile_context>
chip_gen: v5e
topology: v5e:2x2
jax: 0.10.0
libtpu: 0.0.40
codegen_flags: <defaults>
</compile_context>

<pallas_src>
import jax
import jax.numpy as jnp
from jax.experimental import pallas as pl
from jax.experimental.pallas import tpu as pltpu


def _round_up(x, m):
    return ((x + m - 1) // m) * m


def mlp_kernel(x_ref, w1_ref, b1_ref, w2_ref, b2_ref, o_ref, h_ref):
    j = pl.program_id(1)

    # Layer 1 (+ ReLU) computed once per batch tile (j == 0), cached in the
    # bf16 VMEM scratch h_ref and reused for every output-column tile.
    @pl.when(j == 0)
    def _():
        xb = x_ref[...].astype(w1_ref.dtype)                     # bf16 MXU operands
        h = jnp.dot(xb, w1_ref[...], preferred_element_type=jnp.float32)
        h = h + b1_ref[...]                                      # f32 bias add
        h_ref[...] = jnp.maximum(h, 0.0).astype(h_ref.dtype)     # bf16 scratch

    # Layer 2 on the current (lane-dense) output-column tile.
    y = jnp.dot(h_ref[...], w2_ref[...], preferred_element_type=jnp.float32)
    y = y + b2_ref[...]                                          # f32 bias add
    o_ref[...] = y.astype(o_ref.dtype)
    # TODO(synk): Dropout / BatchNorm1d / Sigmoid branches of the PyTorch
    # module are disabled under the default constructor args; not emitted.


def _vmem_capacity_bytes():
    """Physical VMEM of the attached chip; conservative 64 MiB fallback."""
    try:
        cap = int(getattr(pltpu.get_tpu_info(), "vmem_capacity_bytes", 0))
        if cap > 0:
            return cap
    except Exception:
        pass
    return 64 << 20  # safe on v7x; under-provisions (but still correct) elsewhere


def mlp_forward(x, w1, b1, w2, b2, *, block_b=512, block_e=None,
                compute_dtype=jnp.bfloat16, out_dtype=None):
    """y = relu(x @ w1 + b1) @ w2 + b2.

    x : (B, H); w1: (H, Hm); b1: (1, Hm); w2: (Hm, E); b2: (1, E)
    (weights stored pre-transposed, i.e. (in_features, out_features)).
    """
    B, H = x.shape
    Hm = w1.shape[1]
    E = w2.shape[1]
    out_dtype = x.dtype if out_dtype is None else out_dtype

    x_itemsize = jnp.dtype(x.dtype).itemsize
    cd_itemsize = jnp.dtype(compute_dtype).itemsize
    out_itemsize = jnp.dtype(out_dtype).itemsize

    # ---- lane padding of the inner/outer feature dims (exact: zeros) -------
    Hm_pad = _round_up(max(Hm, 128), 128)
    E_pad0 = _round_up(max(E, 128), 128)

    # ---- generation-aware VMEM budget ---------------------------------------
    cap = _vmem_capacity_bytes()
    headroom = max(8 << 20, cap // 8)       # ~8 MiB on 64 MiB, ~16 MiB on 128 MiB
    budget = cap - headroom

    def vmem_need(bb, be, ge):
        w2_buf = 1 if ge == 1 else 2
        return (H * Hm_pad * cd_itemsize                      # W1 resident (x1)
                + Hm_pad * 4                                  # b1 (x1, f32)
                + Hm_pad * be * cd_itemsize * w2_buf          # W2
                + be * 4 * w2_buf                             # b2 (f32)
                + bb * H * x_itemsize * 2                     # x tile (x2)
                + bb * be * out_itemsize * 2                  # out tile (x2)
                + bb * Hm_pad * cd_itemsize)                  # h scratch (bf16)

    # ---- batch tiling: multiple of 8, and >=2 grid steps when B allows so the
    # "parallel" axis feeds both v7x TensorCores (no-op on 1-TC chips). -------
    B8 = _round_up(B, 8)
    bb = _round_up(max(8, min(block_b, B8)), 8)
    if B8 >= 16:
        bb = min(bb, _round_up(-(-B8 // 2), 8))

    # ---- output-column tiling: keep W2 fully resident when it fits ----------
    if block_e is None:
        e_cands, e = [], E_pad0
        while True:
            e_cands.append(e)
            if e <= 128:
                break
            e = max(128, _round_up(e // 2, 128))
        e_cands = list(dict.fromkeys(e_cands))
    else:
        e_cands = [max(128, min(_round_up(block_e, 128), E_pad0))]

    chosen, bb_try = None, bb
    while chosen is None:
        for be in e_cands:                                   # largest first
            E_pad = _round_up(E_pad0, be)
            ge = E_pad // be
            if vmem_need(bb_try, be, ge) <= budget:
                chosen = (bb_try, be, E_pad, ge)
                break
        if chosen is None:
            if bb_try <= 8:
                # TODO(synk): for very large H*Hm a K-tiled (contraction over H)
                # pipeline would be required; fall back to the smallest tiles.
                be = e_cands[-1]
                E_pad = _round_up(E_pad0, be)
                chosen = (8, be, E_pad, E_pad // be)
            else:
                bb_try = max(8, _round_up(bb_try // 2, 8))

    block_b, block_e, E_pad, grid_e = chosen
    B_pad = _round_up(B8, block_b)
    grid_b = B_pad // block_b

    # ---- pad / cast operands (cheap one-time XLA ops in the wrapper) -------
    if B_pad != B:
        x = jnp.pad(x, ((0, B_pad - B), (0, 0)))
    w1c = w1.astype(compute_dtype)
    b1f = b1.astype(jnp.float32)
    w2c = w2.astype(compute_dtype)
    b2f = b2.astype(jnp.float32)
    if Hm_pad != Hm:
        w1c = jnp.pad(w1c, ((0, 0), (0, Hm_pad - Hm)))
        b1f = jnp.pad(b1f, ((0, 0), (0, Hm_pad - Hm)))
        w2c = jnp.pad(w2c, ((0, Hm_pad - Hm), (0, 0)))
    if E_pad != E:
        w2c = jnp.pad(w2c, ((0, 0), (0, E_pad - E)))
        b2f = jnp.pad(b2f, ((0, 0), (0, E_pad - E)))

    # Invariant blocks (constant index_map) -> single-buffered.
    single = pl.Buffered(1)
    w2_mode = single if grid_e == 1 else pl.Buffered(2)

    vmem_bytes = vmem_need(block_b, block_e, grid_e)
    vmem_limit = int(min(max(vmem_bytes + (2 << 20), 16 << 20), cap - (4 << 20)))

    w2_streams = 1 if grid_e == 1 else grid_b
    cost = pl.CostEstimate(
        flops=2 * B_pad * Hm_pad * (H + E_pad),
        transcendentals=0,
        bytes_accessed=(B_pad * H * x_itemsize
                        + H * Hm_pad * cd_itemsize + Hm_pad * 4
                        + (Hm_pad * E_pad * cd_itemsize + E_pad * 4) * w2_streams
                        + B_pad * E_pad * out_itemsize),
    )

    grid_spec = pltpu.PrefetchScalarGridSpec(
        num_scalar_prefetch=0,
        grid=(grid_b, grid_e),
        in_specs=[
            pl.BlockSpec((block_b, H), lambda i, j: (i, 0)),                          # x tile
            pl.BlockSpec((H, Hm_pad), lambda i, j: (0, 0), pipeline_mode=single),     # W1
            pl.BlockSpec((1, Hm_pad), lambda i, j: (0, 0), pipeline_mode=single),     # b1
            pl.BlockSpec((Hm_pad, block_e), lambda i, j: (0, j), pipeline_mode=w2_mode),  # W2
            pl.BlockSpec((1, block_e), lambda i, j: (0, j), pipeline_mode=w2_mode),       # b2
        ],
        out_specs=pl.BlockSpec((block_b, block_e), lambda i, j: (i, j)),
        scratch_shapes=[pltpu.VMEM((block_b, Hm_pad), compute_dtype)],                # h (bf16)
    )

    out = pl.pallas_call(
        mlp_kernel,
        out_shape=jax.ShapeDtypeStruct((B_pad, E_pad), out_dtype),
        grid_spec=grid_spec,
        compiler_params=pltpu.CompilerParams(
            dimension_semantics=("parallel", "arbitrary"),
            vmem_limit_bytes=vmem_limit,
        ),
        cost_estimate=cost,
    )(x, w1c, b1f, w2c, b2f)

    # Strip batch / lane padding.
    return out[:B, :E]


def init_params(key, hidden_dim, end_dim):
    """Deterministic init matching nn.Linear's U(-1/sqrt(fan_in), 1/sqrt(fan_in))."""
    hm = hidden_dim // 2
    k1, k2, k3, k4 = jax.random.split(key, 4)
    bound1 = 1.0 / jnp.sqrt(hidden_dim)
    bound2 = 1.0 / jnp.sqrt(hm)
    # Stored as (in, out) — i.e. transpose of PyTorch's (out, in) weight.
    w1 = jax.random.uniform(k1, (hidden_dim, hm), jnp.float32, -bound1, bound1)
    b1 = jax.random.uniform(k2, (1, hm), jnp.float32, -bound1, bound1)
    w2 = jax.random.uniform(k3, (hm, end_dim), jnp.float32, -bound2, bound2)
    b2 = jax.random.uniform(k4, (1, end_dim), jnp.float32, -bound2, bound2)
    return w1, b1, w2, b2


if __name__ == "__main__":
    hidden_dim = 32
    end_dim = 1
    B = 500   # not a multiple of block_b -> exercises batch padding + 2 grid steps

    key = jax.random.PRNGKey(0)
    kx, kp = jax.random.split(key)
    x = jax.random.normal(kx, (B, hidden_dim), jnp.float32)
    w1, b1, w2, b2 = init_params(kp, hidden_dim, end_dim)

    out = mlp_forward(x, w1, b1, w2, b2)
    out = jax.block_until_ready(out)
    assert out.shape == (B, end_dim)

    # Reference with the same bf16-operand / f32-accumulate / bf16-h arithmetic.
    bf = jnp.bfloat16
    h_ref = jnp.maximum(jnp.dot(x.astype(bf), w1.astype(bf),
                                preferred_element_type=jnp.float32) + b1, 0.0)
    ref = jnp.dot(h_ref.astype(bf), w2.astype(bf),
                  preferred_element_type=jnp.float32) + b2
    err = float(jnp.max(jnp.abs(out - ref)))
    assert jnp.allclose(out, ref, atol=1e-3, rtol=1e-3), err

    # Loose sanity check against the pure-f32 reference (bf16 rounding only).
    ref_f32 = jnp.maximum(x @ w1 + b1, 0.0) @ w2 + b2
    assert jnp.allclose(out, ref_f32, atol=5e-2, rtol=5e-2)

    print("KERNEL_OK")
</pallas_src>

<mosaic_0001>
module attributes {stable_mosaic.version = 11 : i64} {
  func.func @mlp_kernel(%arg0: i32, %arg1: i32, %arg2: memref<256x32xf32, #tpu.memory_space<vmem>>, %arg3: memref<32x128xbf16, #tpu.memory_space<vmem>>, %arg4: memref<1x128xf32, #tpu.memory_space<vmem>>, %arg5: memref<128x128xbf16, #tpu.memory_space<vmem>>, %arg6: memref<1x128xf32, #tpu.memory_space<vmem>>, %arg7: memref<256x128xf32, #tpu.memory_space<vmem>>, %arg8: memref<256x128xbf16, #tpu.memory_space<vmem>>) attributes {dimension_semantics = [#tpu.dimension_semantics<parallel>, #tpu.dimension_semantics<arbitrary>], iteration_bounds = array<i64: 2, 1>, scalar_prefetch = 0 : i64, scratch_operands = 1 : i64, tpu.core_type = #tpu.core_type<tc>, window_params = [{transform_indices = @transform_0, window_bounds = array<i64: 256, 32>}, {pipeline_mode = #tpu.pipeline_mode<synchronous>, transform_indices = @transform_1, window_bounds = array<i64: 32, 128>}, {pipeline_mode = #tpu.pipeline_mode<synchronous>, transform_indices = @transform_2, window_bounds = array<i64: 1, 128>}, {pipeline_mode = #tpu.pipeline_mode<synchronous>, transform_indices = @transform_3, window_bounds = array<i64: 128, 128>}, {pipeline_mode = #tpu.pipeline_mode<synchronous>, transform_indices = @transform_4, window_bounds = array<i64: 1, 128>}, {transform_indices = @transform_5, window_bounds = array<i64: 256, 128>}]} {
    %c0_i32 = arith.constant 0 : i32
    %0 = arith.cmpi eq, %arg1, %c0_i32 : i32
    %1 = arith.extui %0 : i1 to i32
    %c0_i32_0 = arith.constant 0 : i32
    %2 = arith.cmpi ne, %1, %c0_i32_0 : i32
    scf.if %2 {
      %c0_8 = arith.constant 0 : index
      %c0_9 = arith.constant 0 : index
      %10 = vector.load %arg2[%c0_8, %c0_9] : memref<256x32xf32, #tpu.memory_space<vmem>>, vector<256x32xf32>
      %11 = arith.truncf %10 : vector<256x32xf32> to vector<256x32xbf16>
      %c0_10 = arith.constant 0 : index
      %c0_11 = arith.constant 0 : index
      %12 = vector.load %arg3[%c0_10, %c0_11] : memref<32x128xbf16, #tpu.memory_space<vmem>>, vector<32x128xbf16>
      %cst_12 = arith.constant dense<0.000000e+00> : vector<256x128xf32>
      %13 = tpu.matmul %11, %12, %cst_12 {dimension_numbers = #tpu.dot_dimension_numbers<[1], [0], [0], [1], [0, 0, 1, 1], [], []>} : vector<256x32xbf16>, vector<32x128xbf16>, vector<256x128xf32> -> vector<256x128xf32>
      %c0_13 = arith.constant 0 : index
      %c0_14 = arith.constant 0 : index
      %14 = vector.load %arg4[%c0_13, %c0_14] : memref<1x128xf32, #tpu.memory_space<vmem>>, vector<1x128xf32>
      %15 = vector.broadcast %14 : vector<1x128xf32> to vector<256x128xf32>
      %16 = arith.addf %13, %15 : vector<256x128xf32>
      %cst_15 = arith.constant 0.000000e+00 : f32
      %17 = vector.broadcast %cst_15 : f32 to vector<256x128xf32>
      %18 = arith.maximumf %16, %17 : vector<256x128xf32>
      %19 = arith.truncf %18 : vector<256x128xf32> to vector<256x128xbf16>
      %c0_16 = arith.constant 0 : index
      %c0_17 = arith.constant 0 : index
      %20 = vector.load %arg8[%c0_16, %c0_17] : memref<256x128xbf16, #tpu.memory_space<vmem>>, vector<256x128xbf16>
      tpu.vector_store %arg8[%c0_16, %c0_17], %19 {strides = array<i32>} : memref<256x128xbf16, #tpu.memory_space<vmem>>, vector<256x128xbf16>,
    } else {
    }
    %c0 = arith.constant 0 : index
    %c0_1 = arith.constant 0 : index
    %3 = vector.load %arg8[%c0, %c0_1] : memref<256x128xbf16, #tpu.memory_space<vmem>>, vector<256x128xbf16>
    %c0_2 = arith.constant 0 : index
    %c0_3 = arith.constant 0 : index
    %4 = vector.load %arg5[%c0_2, %c0_3] : memref<128x128xbf16, #tpu.memory_space<vmem>>, vector<128x128xbf16>
    %cst = arith.constant dense<0.000000e+00> : vector<256x128xf32>
    %5 = tpu.matmul %3, %4, %cst {dimension_numbers = #tpu.dot_dimension_numbers<[1], [0], [0], [1], [0, 0, 1, 1], [], []>} : vector<256x128xbf16>, vector<128x128xbf16>, vector<256x128xf32> -> vector<256x128xf32>
    %c0_4 = arith.constant 0 : index
    %c0_5 = arith.constant 0 : index
    %6 = vector.load %arg6[%c0_4, %c0_5] : memref<1x128xf32, #tpu.memory_space<vmem>>, vector<1x128xf32>
    %7 = vector.broadcast %6 : vector<1x128xf32> to vector<256x128xf32>
    %8 = arith.addf %5, %7 : vector<256x128xf32>
    %c0_6 = arith.constant 0 : index
    %c0_7 = arith.constant 0 : index
    %9 = vector.load %arg7[%c0_6, %c0_7] : memref<256x128xf32, #tpu.memory_space<vmem>>, vector<256x128xf32>
    tpu.vector_store %arg7[%c0_6, %c0_7], %8 {strides = array<i32>} : memref<256x128xf32, #tpu.memory_space<vmem>>, vector<256x128xf32>,
    return
  }
  func.func @transform_0(%arg0: i32, %arg1: i32) -> (i32, i32) {
    %c0_i32 = arith.constant 0 : i32
    %c0_i32_0 = arith.constant 0 : i32
    return %arg0, %c0_i32 : i32, i32
  }
  func.func @transform_1(%arg0: i32, %arg1: i32) -> (i32, i32) {
    %c0_i32 = arith.constant 0 : i32
    %c0_i32_0 = arith.constant 0 : i32
    %c0_i32_1 = arith.constant 0 : i32
    return %c0_i32, %c0_i32_0 : i32, i32
  }
  func.func @transform_2(%arg0: i32, %arg1: i32) -> (i32, i32) {
    %c0_i32 = arith.constant 0 : i32
    %c0_i32_0 = arith.constant 0 : i32
    %c0_i32_1 = arith.constant 0 : i32
    return %c0_i32, %c0_i32_0 : i32, i32
  }
  func.func @transform_3(%arg0: i32, %arg1: i32) -> (i32, i32) {
    %c0_i32 = arith.constant 0 : i32
    %c0_i32_0 = arith.constant 0 : i32
    return %c0_i32, %arg1 : i32, i32
  }
  func.func @transform_4(%arg0: i32, %arg1: i32) -> (i32, i32) {
    %c0_i32 = arith.constant 0 : i32
    %c0_i32_0 = arith.constant 0 : i32
    return %c0_i32, %arg1 : i32, i32
  }
  func.func @transform_5(%arg0: i32, %arg1: i32) -> (i32, i32) {
    %c0_i32 = arith.constant 0 : i32
    return %arg0, %arg1 : i32, i32
  }
}

</mosaic_0001>

<llo_original>
// kernel: tpu_custom_call.1
$region0: #{tpu_custom_call.1}
  #allocation0 [shape = 'u32[]', space=smem, size = 0x4, offset = 0x4, fixed_abs, tag = 'smem constant byte address 0x4 - core index']
  #allocation1 [shape = 'u32[72,128]{1,0:T(1,128)}', space=vmem, size = 0x9000, scoped, tag = 'internal scratch']
  #allocation2 [shape = 'bf16[256,128]{1,0:T(8,128)(2,1)}', space=vmem, size = 0x10000, scoped, tag = 'scratch operand']
  %s0 = inlined_call_operand.vmem [shape: f32[512,32], index: 0, kind: input, shape index: {}]
  %s1 = inlined_call_operand.vmem [shape: bf16[32,128], index: 1, kind: input, shape index: {}]
  %s2 = inlined_call_operand.vmem [shape: f32[1,128], index: 2, kind: input, shape index: {}]
  %s3 = inlined_call_operand.vmem [shape: bf16[128,128], index: 3, kind: input, shape index: {}]
  %s4 = inlined_call_operand.vmem [shape: f32[1,128], index: 4, kind: input, shape index: {}]
  %s5 = inlined_call_operand.hbm [shape: f32[512,128], index: 5, kind: output, shape index: {}]
  %s6 = sld [smem:[#allocation0]]
  $region57: #{tpu_custom_call.1} parent=0
    _
  %s8 = ssub.s32 1, %s6
  %s9 = scalar_select 0, %s8, %s6
  $region1: #{tpu_custom_call.1} parent=0
    #allocation3 [shape = 'u8[262144]{0}', space=vmem, size = 0x40000, scoped, tag = 'output window, operand 0']
    #allocation4 [shape = 's32[2]{0}', space=sflag, size = 0x8, scoped, tag = 'scoped memory for tpu_custom_call.1']
    %10 = vsyncpa [#allocation4], 0
    %s11 = scalar_lea.sflag [#allocation4], 1
    %12 = vsyncpa %s11, 0
    loop: start=0, step=1, limit=4
    $region2: #{tpu_custom_call.1} parent=1 // loop_pre_header
      _
    $region3: #{tpu_custom_call.1} parent=1 // loop_header
      %s14 = sphi 0, %s18
      %p15 = scmp.ge.s32.totalorder %s14, 4
      %s21 = sphi 0, %s33
      %s22 = sphi 0, %s29
      %s23 = sphi 0, %s21
      %s24 = sphi 0, %s22
      %s25 = sphi 0, %s23
      %s26 = sphi 0, %s24
      %s36 = sphi 0, %s38
      %s39 = sphi 0, %s36
      %s40 = sphi 0, %s39
      %s56 = sphi 0, %s40
      %s60 = sphi 0, %s60
      %s62 = sphi 0, %s60
      %s63 = sphi 0, %s62
      %s77 = sphi 0, %s63
      %s81 = sphi 0, %s81
      %s83 = sphi 0, %s81
      %s84 = sphi 0, %s83
      %s98 = sphi 0, %s84
      %s104 = sphi 0, %s106
      %s107 = sphi 0, %s104
      %s108 = sphi 0, %s107
      %s124 = sphi 0, %s108
      %s130 = sphi 0, %s132
      %s133 = sphi 0, %s130
      %s134 = sphi 0, %s133
      %s150 = sphi 0, %s134
      %s158 = sphi 0, %s160
      %s161 = sphi 0, %s158
      %s162 = sphi 0, %s161
      %s178 = sphi 0, %s162
    $region4: #{tpu_custom_call.1} parent=1 // loop_header_branch
      %17 = sbr.rel (%p15) target = $region8
    $region5: #{tpu_custom_call.1} parent=1 // loop_body
      %s19 = ssub.s32 %s14, 1
      %s20 = ssub.s32 %s14, 2
      %s27 = sadd.s32 1, %s22
      %p28 = scmp.ge.s32.totalorder %s27, 1
      %s29 = scalar_select %p28, 0, %s27
      %s30 = sadd.s32 1, %s21
      %s31 = scalar_select %p28, %s30, %s21
      %p32 = scmp.ge.s32.totalorder %s31, 2
      %s33 = scalar_select %p32, 0, %s31
      %s34 = ssub.s32 %s21, %s33
      %p35 = scmp.eq.s32.totalorder %s34, 0
      %s37 = sadd.s32 %s36, 1
      %s38 = scalar_select %p35, %s36, %s37
      %p41 = pneg %p35
      %p42 = scmp.eq.s32.totalorder %s14, 1
      %p43 = por %p41, %p42
      %p44 = scmp.ne.s32.totalorder %s36, %s39
      %p45 = scmp.eq.s32.totalorder %s14, 0
      %p46 = por %p44, %p45
      %p47 = scmp.ne.s32.totalorder %s36, %s39
      %p48 = scmp.eq.s32.totalorder %s19, 1
      %p49 = por %p47, %p48
      %p50 = scmp.ne.s32.totalorder %s39, %s40
      %p51 = scmp.eq.s32.totalorder %s19, 0
      %p52 = por %p50, %p51
      %p53 = scmp.ne.s32.totalorder %s39, %s40
      %p54 = scmp.eq.s32.totalorder %s20, 1
      %p55 = por %p53, %p54
      %p57 = scmp.ne.s32.totalorder %s40, %s56
      %p58 = scmp.eq.s32.totalorder %s20, 0
      %p59 = por %p57, %p58
      %s61 = sadd.s32 %s60, 1
      %p64 = scmp.eq.s32.totalorder %s14, 1
      %p65 = scmp.ne.s32.totalorder %s60, %s62
      %p66 = scmp.eq.s32.totalorder %s14, 0
      %p67 = por %p65, %p66
      %p68 = scmp.ne.s32.totalorder %s60, %s62
      %p69 = scmp.eq.s32.totalorder %s19, 1
      %p70 = por %p68, %p69
      %p71 = scmp.ne.s32.totalorder %s62, %s63
      %p72 = scmp.eq.s32.totalorder %s19, 0
      %p73 = por %p71, %p72
      %p74 = scmp.ne.s32.totalorder %s62, %s63
      %p75 = scmp.eq.s32.totalorder %s20, 1
      %p76 = por %p74, %p75
      %p78 = scmp.ne.s32.totalorder %s63, %s77
      %p79 = scmp.eq.s32.totalorder %s20, 0
      %p80 = por %p78, %p79
      %s82 = sadd.s32 %s81, 1
      %p85 = scmp.eq.s32.totalorder %s14, 1
      %p86 = scmp.ne.s32.totalorder %s81, %s83
      %p87 = scmp.eq.s32.totalorder %s14, 0
      %p88 = por %p86, %p87
      %p89 = scmp.ne.s32.totalorder %s81, %s83
      %p90 = scmp.eq.s32.totalorder %s19, 1
      %p91 = por %p89, %p90
      %p92 = scmp.ne.s32.totalorder %s83, %s84
      %p93 = scmp.eq.s32.totalorder %s19, 0
      %p94 = por %p92, %p93
      %p95 = scmp.ne.s32.totalorder %s83, %s84
      %p96 = scmp.eq.s32.totalorder %s20, 1
      %p97 = por %p95, %p96
      %p99 = scmp.ne.s32.totalorder %s84, %s98
      %p100 = scmp.eq.s32.totalorder %s20, 0
      %p101 = por %p99, %p100
      %s102 = ssub.s32 %s22, %s29
      %p103 = scmp.eq.s32.totalorder %s102, 0
      %s105 = sadd.s32 %s104, 1
      %s106 = scalar_select %p103, %s104, %s105
      %p109 = pneg %p103
      %p110 = scmp.eq.s32.totalorder %s14, 1
      %p111 = por %p109, %p110
      %p112 = scmp.ne.s32.totalorder %s104, %s107
      %p113 = scmp.eq.s32.totalorder %s14, 0
      %p114 = por %p112, %p113
      %p115 = scmp.ne.s32.totalorder %s104, %s107
      %p116 = scmp.eq.s32.totalorder %s19, 1
      %p117 = por %p115, %p116
      %p118 = scmp.ne.s32.totalorder %s107, %s108
      %p119 = scmp.eq.s32.totalorder %s19, 0
      %p120 = por %p118, %p119
      %p121 = scmp.ne.s32.totalorder %s107, %s108
      %p122 = scmp.eq.s32.totalorder %s20, 1
      %p123 = por %p121, %p122
      %p125 = scmp.ne.s32.totalorder %s108, %s124
      %p126 = scmp.eq.s32.totalorder %s20, 0
      %p127 = por %p125, %p126
      %s128 = ssub.s32 %s22, %s29
      %p129 = scmp.eq.s32.totalorder %s128, 0
      %s131 = sadd.s32 %s130, 1
      %s132 = scalar_select %p129, %s130, %s131
      %p135 = pneg %p129
      %p136 = scmp.eq.s32.totalorder %s14, 1
      %p137 = por %p135, %p136
      %p138 = scmp.ne.s32.totalorder %s130, %s133
      %p139 = scmp.eq.s32.totalorder %s14, 0
      %p140 = por %p138, %p139
      %p141 = scmp.ne.s32.totalorder %s130, %s133
      %p142 = scmp.eq.s32.totalorder %s19, 1
      %p143 = por %p141, %p142
      %p144 = scmp.ne.s32.totalorder %s133, %s134
      %p145 = scmp.eq.s32.totalorder %s19, 0
      %p146 = por %p144, %p145
      %p147 = scmp.ne.s32.totalorder %s133, %s134
      %p148 = scmp.eq.s32.totalorder %s20, 1
      %p149 = por %p147, %p148
      %p151 = scmp.ne.s32.totalorder %s134, %s150
      %p152 = scmp.eq.s32.totalorder %s20, 0
      %p153 = por %p151, %p152
      %s154 = ssub.s32 %s21, %s33
      %s155 = ssub.s32 %s22, %s29
      %s156 = sor.u32 %s154, %s155
      %p157 = scmp.eq.s32.totalorder %s156, 0
      %s159 = sadd.s32 %s158, 1
      %s160 = scalar_select %p157, %s158, %s159
      %p163 = pneg %p157
      %p164 = scmp.eq.s32.totalorder %s14, 1
      %p165 = por %p163, %p164
      %p166 = scmp.ne.s32.totalorder %s158, %s161
      %p167 = scmp.eq.s32.totalorder %s14, 0
      %p168 = por %p166, %p167
      %p169 = scmp.ne.s32.totalorder %s158, %s161
      %p170 = scmp.eq.s32.totalorder %s19, 1
      %p171 = por %p169, %p170
      %p172 = scmp.ne.s32.totalorder %s161, %s162
      %p173 = scmp.eq.s32.totalorder %s19, 0
      %p174 = por %p172, %p173
      %p175 = scmp.ne.s32.totalorder %s161, %s162
      %p176 = scmp.eq.s32.totalorder %s20, 1
      %p177 = por %p175, %p176
      %p179 = scmp.ne.s32.totalorder %s162, %s178
      %p180 = scmp.eq.s32.totalorder %s20, 0
      %p181 = por %p179, %p180
      %p182 = scmp.le.s32.totalorder 1, %s14
      %p183 = scmp.lt.s32.totalorder %s14, 3
      %p184 = pnand %p182, %p183
      %p185 = pneg %p184
      // Predicated region
      $region9: #{tpu_custom_call.1} parent=5 // pred_check
        _
      $region10: #{tpu_custom_call.1} parent=5 // pred_check_branch
        %187 = sbr.rel (%p184) target = $region12
      $region11: #{tpu_custom_call.1} parent=5 // pred_region
        %s188 = ssub.s32 %s14, 1
        // Predicated region
        $region13: #{tpu_custom_call.1} parent=11 // pred_check
          %p189 = pneg %p73
        $region14: #{tpu_custom_call.1} parent=11 // pred_check_branch
          %191 = sbr.rel (%p189) target = $region16
        $region15: #{tpu_custom_call.1} parent=11 // pred_region
          _
        $region16: #{tpu_custom_call.1} parent=11 // pred_fallthru
          _
        // Predicated region
        $region17: #{tpu_custom_call.1} parent=11 // pred_check
          %p192 = pneg %p94
        $region18: #{tpu_custom_call.1} parent=11 // pred_check_branch
          %194 = sbr.rel (%p192) target = $region20
        $region19: #{tpu_custom_call.1} parent=11 // pred_region
          _
        $region20: #{tpu_custom_call.1} parent=11 // pred_fallthru
          _
        // Predicated region
        $region21: #{tpu_custom_call.1} parent=11 // pred_check
          %p195 = pneg %p120
        $region22: #{tpu_custom_call.1} parent=11 // pred_check_branch
          %197 = sbr.rel (%p195) target = $region24
        $region23: #{tpu_custom_call.1} parent=11 // pred_region
          %p198 = scmp.lt.s32.totalorder %s24, 0
          %s199 = scalar_select %p198, %s24, 0
          %s200 = smul.addr %s199, 4
          %s201 = scalar_lea.vmem %s3, %s200
        $region24: #{tpu_custom_call.1} parent=11 // pred_fallthru
          _
        // Predicated region
        $region25: #{tpu_custom_call.1} parent=11 // pred_check
          %p202 = pneg %p146
        $region26: #{tpu_custom_call.1} parent=11 // pred_check_branch
          %204 = sbr.rel (%p202) target = $region28
        $region27: #{tpu_custom_call.1} parent=11 // pred_region
          %p205 = scmp.lt.s32.totalorder %s24, 0
          %s206 = scalar_select %p205, %s24, 0
          %s207 = scalar_lea.vmem %s4, %s206
        $region28: #{tpu_custom_call.1} parent=11 // pred_fallthru
          _
      $region12: #{tpu_custom_call.1} parent=5 // pred_fallthru
        _
      %p208 = scmp.lt.s32.totalorder %s14, 2
      // Predicated region
      $region29: #{tpu_custom_call.1} parent=5 // pred_check
        %p209 = pneg %p208
      $region30: #{tpu_custom_call.1} parent=5 // pred_check_branch
        %211 = sbr.rel (%p209) target = $region32
      $region31: #{tpu_custom_call.1} parent=5 // pred_region
        // Predicated region
        $region33: #{tpu_custom_call.1} parent=31 // pred_check
          %p212 = pneg %p46
        $region34: #{tpu_custom_call.1} parent=31 // pred_check_branch
          %214 = sbr.rel (%p212) target = $region36
        $region35: #{tpu_custom_call.1} parent=31 // pred_region
          %s215 = smul.u32 32, %s21
          %p216 = scmp.lt.s32.totalorder %s215, 63
          %s217 = scalar_select %p216, %s215, 63
          %s218 = smul.addr %s217, 8
          %s219 = scalar_lea.vmem %s0, %s218
          %s220 = smul.u32 32, %s21
        $region36: #{tpu_custom_call.1} parent=31 // pred_fallthru
          _
      $region32: #{tpu_custom_call.1} parent=5 // pred_fallthru
        _
      %p221 = scmp.le.s32.totalorder 1, %s14
      %p222 = scmp.lt.s32.totalorder %s14, 3
      %p223 = pnand %p221, %p222
      %p224 = pneg %p223
      // Predicated region
      $region37: #{tpu_custom_call.1} parent=5 // pred_check
        _
      $region38: #{tpu_custom_call.1} parent=5 // pred_check_branch
        %226 = sbr.rel (%p223) target = $region40
      $region39: #{tpu_custom_call.1} parent=5 // pred_region
        %s227 = ssub.s32 %s14, 1
        %s228 = smul.u32 32, %s23
        %p229 = scmp.lt.s32.totalorder %s228, 63
        %s230 = scalar_select %p229, %s228, 63
        %s231 = smul.addr %s230, 8
        %s232 = scalar_lea.vmem %s0, %s231
        %p233 = pneg %p52
        %p234 = pneg %p49
        %p235 = pneg %p73
        %p236 = pneg %p70
        %p237 = pneg %p94
        %p238 = pneg %p91
        %p239 = scmp.lt.s32.totalorder %s24, 0
        %s240 = scalar_select %p239, %s24, 0
        %s241 = smul.addr %s240, 4
        %s242 = scalar_lea.vmem %s3, %s241
        %p243 = pneg %p120
        %p244 = pneg %p117
        %p245 = scmp.lt.s32.totalorder %s24, 0
        %s246 = scalar_select %p245, %s24, 0
        %s247 = scalar_lea.vmem %s4, %s246
        %p248 = pneg %p146
        %p249 = pneg %p143
        %p250 = pneg %p174
        %p251 = pneg %p171
        %s252 = sand.u32 %s161, 1
        %s253 = scalar_lea.sflag [#allocation4], %s252
        %s254 = sand.u32 %s161, 1
        %s255 = smul.addr %s254, 256
        %s256 = scalar_lea.vmem [#allocation3], %s255
        %s257 = smul.u32 32, %s23
        %p258 = scmp.lt.s32.totalorder %s257, 63
        %s259 = scalar_select %p258, %s257, 63
        %s260 = smul.addr %s259, 8
        %s261 = scalar_lea.vmem %s0, %s260
        %s262 = smul.u32 32, %s23
        %p263 = scmp.lt.s32.totalorder %s24, 0
        %s264 = scalar_select %p263, %s24, 0
        %s265 = smul.addr %s264, 4
        %s266 = scalar_lea.vmem %s3, %s265
        %p267 = scmp.lt.s32.totalorder %s24, 0
        %s268 = scalar_select %p267, %s24, 0
        %s269 = scalar_lea.vmem %s4, %s268
        %s270 = smul.u32 32, %s23
        %p272 = scmp.eq.s32.totalorder %s24, 0
        // Predicated region
        $region41: #{tpu_custom_call.1} parent=39 // pred_check
          %p273 = pneg %p272
        $region42: #{tpu_custom_call.1} parent=39 // pred_check_branch
          %275 = sbr.rel (%p273) target = $region44
        $region43: #{tpu_custom_call.1} parent=39 // pred_region
          %v276 = vld [vmem:[%s261] sm:$0xff]
          %v277 = vld [vmem:[%s261 + $0x8] sm:$0xff]
          %v278 = vld [vmem:[%s261 + $0x10] sm:$0xff]
          %v279 = vld [vmem:[%s261 + $0x18] sm:$0xff]
          %v280 = vld [vmem:[%s261 + $0x20] sm:$0xff]
          %v281 = vld [vmem:[%s261 + $0x28] sm:$0xff]
          %v282 = vld [vmem:[%s261 + $0x30] sm:$0xff]
          %v283 = vld [vmem:[%s261 + $0x38] sm:$0xff]
          %v284 = vld [vmem:[%s261 + $0x40] sm:$0xff]
          %v285 = vld [vmem:[%s261 + $0x48] sm:$0xff]
          %v286 = vld [vmem:[%s261 + $0x50] sm:$0xff]
          %v287 = vld [vmem:[%s261 + $0x58] sm:$0xff]
          %v288 = vld [vmem:[%s261 + $0x60] sm:$0xff]
          %v289 = vld [vmem:[%s261 + $0x68] sm:$0xff]
          %v290 = vld [vmem:[%s261 + $0x70] sm:$0xff]
          %v291 = vld [vmem:[%s261 + $0x78] sm:$0xff]
          %v292 = vld [vmem:[%s261 + $0x80] sm:$0xff]
          %v293 = vld [vmem:[%s261 + $0x88] sm:$0xff]
          %v294 = vld [vmem:[%s261 + $0x90] sm:$0xff]
          %v295 = vld [vmem:[%s261 + $0x98] sm:$0xff]
          %v296 = vld [vmem:[%s261 + $0xa0] sm:$0xff]
          %v297 = vld [vmem:[%s261 + $0xa8] sm:$0xff]
          %v298 = vld [vmem:[%s261 + $0xb0] sm:$0xff]
          %v299 = vld [vmem:[%s261 + $0xb8] sm:$0xff]
          %v300 = vld [vmem:[%s261 + $0xc0] sm:$0xff]
          %v301 = vld [vmem:[%s261 + $0xc8] sm:$0xff]
          %v302 = vld [vmem:[%s261 + $0xd0] sm:$0xff]
          %v303 = vld [vmem:[%s261 + $0xd8] sm:$0xff]
          %v304 = vld [vmem:[%s261 + $0xe0] sm:$0xff]
          %v305 = vld [vmem:[%s261 + $0xe8] sm:$0xff]
          %v306 = vld [vmem:[%s261 + $0xf0] sm:$0xff]
          %v307 = vld [vmem:[%s261 + $0xf8] sm:$0xff]
          %v308 = vpack.c.bf16 %v277, %v276
          %v309 = vpack.c.bf16 %v279, %v278
          %v310 = vpack.c.bf16 %v281, %v280
          %v311 = vpack.c.bf16 %v283, %v282
          %v312 = vpack.c.bf16 %v285, %v284
          %v313 = vpack.c.bf16 %v287, %v286
          %v314 = vpack.c.bf16 %v289, %v288
          %v315 = vpack.c.bf16 %v291, %v290
          %v316 = vpack.c.bf16 %v293, %v292
          %v317 = vpack.c.bf16 %v295, %v294
          %v318 = vpack.c.bf16 %v297, %v296
          %v319 = vpack.c.bf16 %v299, %v298
          %v320 = vpack.c.bf16 %v301, %v300
          %v321 = vpack.c.bf16 %v303, %v302
          %v322 = vpack.c.bf16 %v305, %v304
          %v323 = vpack.c.bf16 %v307, %v306
          %v324 = vld [vmem:[%s1] sm:$0xf]
          %v325 = vld [vmem:[%s1 + $0x4] sm:$0xf]
          %v326 = vld [vmem:[%s1 + $0x8] sm:$0xf]
          %v327 = vld [vmem:[%s1 + $0xc] sm:$0xf]
          %v328 = vld [vmem:[%s2] sm:$0x1]
          %v330 = vperm.slane %v328, 0
          %v336 = vunpack.c.l.b16 %v324
          %v337 = vunpack.c.l.b16 %v325
          %v338 = vunpack.c.l.b16 %v326
          %v339 = vunpack.c.l.b16 %v327
          %v340 = vpack.c.b16 %v337, %v336
          %v341 = vpack.c.b16 %v339, %v338
          %vm344 = vcmask 261120
          %v346 = vsel %vm344, %v308, 0
          %v349 = vsel %vm344, %v309, 0
          %v352 = vsel %vm344, %v310, 0
          %v355 = vsel %vm344, %v311, 0
          %v358 = vsel %vm344, %v312, 0
          %v361 = vsel %vm344, %v313, 0
          %v364 = vsel %vm344, %v314, 0
          %v367 = vsel %vm344, %v315, 0
          %v370 = vsel %vm344, %v316, 0
          %v373 = vsel %vm344, %v317, 0
          %v376 = vsel %vm344, %v318, 0
          %v379 = vsel %vm344, %v319, 0
          %v382 = vsel %vm344, %v320, 0
          %v385 = vsel %vm344, %v321, 0
          %v388 = vsel %vm344, %v322, 0
          %v391 = vsel %vm344, %v323, 0
          %393 = vmatpush.bf16.msra.mxu0 0
          %394 = vmatpush.bf16.msra.mxu0 0
          %395 = vmatpush.bf16.msra.mxu0 0
          %396 = vmatpush.bf16.msra.mxu0 0
          %397 = vmatpush.bf16.msra.mxu0 0
          %398 = vmatpush.bf16.msra.mxu0 0
          %399 = vmatpush.bf16.msra.mxu0 %v341
          %400 = vmatpush.bf16.msra.mxu0 %v340
          %401 = vmatmul.bf16.gmra.mxu0 %v346
          %v402 = vpop.f32.mrf.mxu0
          %v403 = vadd.f32 %v330, %v402
          %v404 = vpop.f32.mrf.mxu0
          %v405 = vadd.f32 %v330, %v404
          %406 = vmatmul.bf16.gmra.mxu0 %v349
          %v407 = vpop.f32.mrf.mxu0
          %v408 = vadd.f32 %v330, %v407
          %v409 = vpop.f32.mrf.mxu0
          %v410 = vadd.f32 %v330, %v409
          %411 = vmatmul.bf16.gmra.mxu0 %v352
          %v412 = vpop.f32.mrf.mxu0
          %v413 = vadd.f32 %v330, %v412
          %v414 = vpop.f32.mrf.mxu0
          %v415 = vadd.f32 %v330, %v414
          %416 = vmatmul.bf16.gmra.mxu0 %v355
          %v417 = vpop.f32.mrf.mxu0
          %v418 = vadd.f32 %v330, %v417
          %v419 = vpop.f32.mrf.mxu0
          %v420 = vadd.f32 %v330, %v419
          %421 = vmatmul.bf16.gmra.mxu0 %v358
          %v422 = vpop.f32.mrf.mxu0
          %v423 = vadd.f32 %v330, %v422
          %v424 = vpop.f32.mrf.mxu0
          %v425 = vadd.f32 %v330, %v424
          %426 = vmatmul.bf16.gmra.mxu0 %v361
          %v427 = vpop.f32.mrf.mxu0
          %v428 = vadd.f32 %v330, %v427
          %v429 = vpop.f32.mrf.mxu0
          %v430 = vadd.f32 %v330, %v429
          %431 = vmatmul.bf16.gmra.mxu0 %v364
          %v432 = vpop.f32.mrf.mxu0
          %v433 = vadd.f32 %v330, %v432
          %v434 = vpop.f32.mrf.mxu0
          %v435 = vadd.f32 %v330, %v434
          %436 = vmatmul.bf16.gmra.mxu0 %v367
          %v437 = vpop.f32.mrf.mxu0
          %v438 = vadd.f32 %v330, %v437
          %v439 = vpop.f32.mrf.mxu0
          %v440 = vadd.f32 %v330, %v439
          %441 = vmatmul.bf16.gmra.mxu0 %v370
          %v442 = vpop.f32.mrf.mxu0
          %v443 = vadd.f32 %v330, %v442
          %v444 = vpop.f32.mrf.mxu0
          %v445 = vadd.f32 %v330, %v444
          %446 = vmatmul.bf16.gmra.mxu0 %v373
          %v447 = vpop.f32.mrf.mxu0
          %v448 = vadd.f32 %v330, %v447
          %v449 = vpop.f32.mrf.mxu0
          %v450 = vadd.f32 %v330, %v449
          %451 = vmatmul.bf16.gmra.mxu0 %v376
          %v452 = vpop.f32.mrf.mxu0
          %v453 = vadd.f32 %v330, %v452
          %v454 = vpop.f32.mrf.mxu0
          %v455 = vadd.f32 %v330, %v454
          %456 = vmatmul.bf16.gmra.mxu0 %v379
          %v457 = vpop.f32.mrf.mxu0
          %v458 = vadd.f32 %v330, %v457
          %v459 = vpop.f32.mrf.mxu0
          %v460 = vadd.f32 %v330, %v459
          %461 = vmatmul.bf16.gmra.mxu0 %v382
          %v462 = vpop.f32.mrf.mxu0
          %v463 = vadd.f32 %v330, %v462
          %v464 = vpop.f32.mrf.mxu0
          %v465 = vadd.f32 %v330, %v464
          %466 = vmatmul.bf16.gmra.mxu0 %v385
          %v467 = vpop.f32.mrf.mxu0
          %v468 = vadd.f32 %v330, %v467
          %v469 = vpop.f32.mrf.mxu0
          %v470 = vadd.f32 %v330, %v469
          %471 = vmatmul.bf16.gmra.mxu0 %v388
          %v472 = vpop.f32.mrf.mxu0
          %v473 = vadd.f32 %v330, %v472
          %v474 = vpop.f32.mrf.mxu0
          %v475 = vadd.f32 %v330, %v474
          %476 = vmatmul.bf16.gmra.mxu0 %v391
          %v477 = vpop.f32.mrf.mxu0
          %v478 = vadd.f32 %v330, %v477
          %v479 = vpop.f32.mrf.mxu0
          %v480 = vadd.f32 %v330, %v479
          %481 = vdwg.mxu0
          %v482 = vmax.f32 %v403, 0.0
          %v483 = vmax.f32 %v405, 0.0
          %v484 = vmax.f32 %v408, 0.0
          %v485 = vmax.f32 %v410, 0.0
          %v486 = vmax.f32 %v413, 0.0
          %v487 = vmax.f32 %v415, 0.0
          %v488 = vmax.f32 %v418, 0.0
          %v489 = vmax.f32 %v420, 0.0
          %v490 = vmax.f32 %v423, 0.0
          %v491 = vmax.f32 %v425, 0.0
          %v492 = vmax.f32 %v428, 0.0
          %v493 = vmax.f32 %v430, 0.0
          %v494 = vmax.f32 %v433, 0.0
          %v495 = vmax.f32 %v435, 0.0
          %v496 = vmax.f32 %v438, 0.0
          %v497 = vmax.f32 %v440, 0.0
          %v498 = vmax.f32 %v443, 0.0
          %v499 = vmax.f32 %v445, 0.0
          %v500 = vmax.f32 %v448, 0.0
          %v501 = vmax.f32 %v450, 0.0
          %v502 = vmax.f32 %v453, 0.0
          %v503 = vmax.f32 %v455, 0.0
          %v504 = vmax.f32 %v458, 0.0
          %v505 = vmax.f32 %v460, 0.0
          %v506 = vmax.f32 %v463, 0.0
          %v507 = vmax.f32 %v465, 0.0
          %v508 = vmax.f32 %v468, 0.0
          %v509 = vmax.f32 %v470, 0.0
          %v510 = vmax.f32 %v473, 0.0
          %v511 = vmax.f32 %v475, 0.0
          %v512 = vmax.f32 %v478, 0.0
          %v513 = vmax.f32 %v480, 0.0
          %v514 = vpack.c.bf16 %v482, %v482
          %v515 = vpack.c.bf16 %v483, %v483
          %v516 = vpack.c.bf16 %v484, %v484
          %v517 = vpack.c.bf16 %v485, %v485
          %v518 = vpack.c.bf16 %v486, %v486
          %v519 = vpack.c.bf16 %v487, %v487
          %v520 = vpack.c.bf16 %v488, %v488
          %v521 = vpack.c.bf16 %v489, %v489
          %v522 = vpack.c.bf16 %v490, %v490
          %v523 = vpack.c.bf16 %v491, %v491
          %v524 = vpack.c.bf16 %v492, %v492
          %v525 = vpack.c.bf16 %v493, %v493
          %v526 = vpack.c.bf16 %v494, %v494
          %v527 = vpack.c.bf16 %v495, %v495
          %v528 = vpack.c.bf16 %v496, %v496
          %v529 = vpack.c.bf16 %v497, %v497
          %v530 = vpack.c.bf16 %v498, %v498
          %v531 = vpack.c.bf16 %v499, %v499
          %v532 = vpack.c.bf16 %v500, %v500
          %v533 = vpack.c.bf16 %v501, %v501
          %v534 = vpack.c.bf16 %v502, %v502
          %v535 = vpack.c.bf16 %v503, %v503
          %v536 = vpack.c.bf16 %v504, %v504
          %v537 = vpack.c.bf16 %v505, %v505
          %v538 = vpack.c.bf16 %v506, %v506
          %v539 = vpack.c.bf16 %v507, %v507
          %v540 = vpack.c.bf16 %v508, %v508
          %v541 = vpack.c.bf16 %v509, %v509
          %v542 = vpack.c.bf16 %v510, %v510
          %v543 = vpack.c.bf16 %v511, %v511
          %v544 = vpack.c.bf16 %v512, %v512
          %v545 = vpack.c.bf16 %v513, %v513
          %546 = vst [vmem:[#allocation2] sm:$0xf] %v514
          %547 = vst [vmem:[#allocation2 + $0x4] sm:$0xf] %v515
          %548 = vst [vmem:[#allocation2 + $0x8] sm:$0xf] %v516
          %549 = vst [vmem:[#allocation2 + $0xc] sm:$0xf] %v517
          %550 = vst [vmem:[#allocation2 + $0x10] sm:$0xf] %v518
          %551 = vst [vmem:[#allocation2 + $0x14] sm:$0xf] %v519
          %552 = vst [vmem:[#allocation2 + $0x18] sm:$0xf] %v520
          %553 = vst [vmem:[#allocation2 + $0x1c] sm:$0xf] %v521
          %554 = vst [vmem:[#allocation2 + $0x20] sm:$0xf] %v522
          %555 = vst [vmem:[#allocation2 + $0x24] sm:$0xf] %v523
          %556 = vst [vmem:[#allocation2 + $0x28] sm:$0xf] %v524
          %557 = vst [vmem:[#allocation2 + $0x2c] sm:$0xf] %v525
          %558 = vst [vmem:[#allocation2 + $0x30] sm:$0xf] %v526
          %559 = vst [vmem:[#allocation2 + $0x34] sm:$0xf] %v527
          %560 = vst [vmem:[#allocation2 + $0x38] sm:$0xf] %v528
          %561 = vst [vmem:[#allocation2 + $0x3c] sm:$0xf] %v529
          %562 = vst [vmem:[#allocation2 + $0x40] sm:$0xf] %v530
          %563 = vst [vmem:[#allocation2 + $0x44] sm:$0xf] %v531
          %564 = vst [vmem:[#allocation2 + $0x48] sm:$0xf] %v532
          %565 = vst [vmem:[#allocation2 + $0x4c] sm:$0xf] %v533
          %566 = vst [vmem:[#allocation2 + $0x50] sm:$0xf] %v534
          %567 = vst [vmem:[#allocation2 + $0x54] sm:$0xf] %v535
          %568 = vst [vmem:[#allocation2 + $0x58] sm:$0xf] %v536
          %569 = vst [vmem:[#allocation2 + $0x5c] sm:$0xf] %v537
          %570 = vst [vmem:[#allocation2 + $0x60] sm:$0xf] %v538
          %571 = vst [vmem:[#allocation2 + $0x64] sm:$0xf] %v539
          %572 = vst [vmem:[#allocation2 + $0x68] sm:$0xf] %v540
          %573 = vst [vmem:[#allocation2 + $0x6c] sm:$0xf] %v541
          %574 = vst [vmem:[#allocation2 + $0x70] sm:$0xf] %v542
          %575 = vst [vmem:[#allocation2 + $0x74] sm:$0xf] %v543
          %576 = vst [vmem:[#allocation2 + $0x78] sm:$0xf] %v544
          %577 = vst [vmem:[#allocation2 + $0x7c] sm:$0xf] %v545
        $region44: #{tpu_custom_call.1} parent=39 // pred_fallthru
          _
        %v578 = vld [vmem:[#allocation2] sm:$0xf]
        %v579 = vld [vmem:[#allocation2 + $0x4] sm:$0xf]
        %v580 = vld [vmem:[#allocation2 + $0x8] sm:$0xf]
        %v581 = vld [vmem:[#allocation2 + $0xc] sm:$0xf]
        %v582 = vld [vmem:[#allocation2 + $0x10] sm:$0xf]
        %v583 = vld [vmem:[#allocation2 + $0x14] sm:$0xf]
        %v584 = vld [vmem:[#allocation2 + $0x18] sm:$0xf]
        %v585 = vld [vmem:[#allocation2 + $0x1c] sm:$0xf]
        %v586 = vld [vmem:[#allocation2 + $0x20] sm:$0xf]
        %v587 = vld [vmem:[#allocation2 + $0x24] sm:$0xf]
        %v588 = vld [vmem:[#allocation2 + $0x28] sm:$0xf]
        %v589 = vld [vmem:[#allocation2 + $0x2c] sm:$0xf]
        %v590 = vld [vmem:[#allocation2 + $0x30] sm:$0xf]
        %v591 = vld [vmem:[#allocation2 + $0x34] sm:$0xf]
        %v592 = vld [vmem:[#allocation2 + $0x38] sm:$0xf]
        %v593 = vld [vmem:[#allocation2 + $0x3c] sm:$0xf]
        %v594 = vld [vmem:[#allocation2 + $0x40] sm:$0xf]
        %v595 = vld [vmem:[#allocation2 + $0x44] sm:$0xf]
        %v596 = vld [vmem:[#allocation2 + $0x48] sm:$0xf]
        %v597 = vld [vmem:[#allocation2 + $0x4c] sm:$0xf]
        %v598 = vld [vmem:[#allocation2 + $0x50] sm:$0xf]
        %v599 = vld [vmem:[#allocation2 + $0x54] sm:$0xf]
        %v600 = vld [vmem:[#allocation2 + $0x58] sm:$0xf]
        %v601 = vld [vmem:[#allocation2 + $0x5c] sm:$0xf]
        %v602 = vld [vmem:[#allocation2 + $0x60] sm:$0xf]
        %v603 = vld [vmem:[#allocation2 + $0x64] sm:$0xf]
        %v604 = vld [vmem:[#allocation2 + $0x68] sm:$0xf]
        %v605 = vld [vmem:[#allocation2 + $0x6c] sm:$0xf]
        %v606 = vld [vmem:[#allocation2 + $0x70] sm:$0xf]
        %v607 = vld [vmem:[#allocation2 + $0x74] sm:$0xf]
        %v608 = vld [vmem:[#allocation2 + $0x78] sm:$0xf]
        %v609 = vld [vmem:[#allocation2 + $0x7c] sm:$0xf]
        %v610 = vld [vmem:[%s266] sm:$0xf]
        %v611 = vld [vmem:[%s266 + $0x4] sm:$0xf]
        %v612 = vld [vmem:[%s266 + $0x8] sm:$0xf]
        %v613 = vld [vmem:[%s266 + $0xc] sm:$0xf]
        %v614 = vld [vmem:[%s266 + $0x10] sm:$0xf]
        %v615 = vld [vmem:[%s266 + $0x14] sm:$0xf]
        %v616 = vld [vmem:[%s266 + $0x18] sm:$0xf]
        %v617 = vld [vmem:[%s266 + $0x1c] sm:$0xf]
        %v618 = vld [vmem:[%s266 + $0x20] sm:$0xf]
        %v619 = vld [vmem:[%s266 + $0x24] sm:$0xf]
        %v620 = vld [vmem:[%s266 + $0x28] sm:$0xf]
        %v621 = vld [vmem:[%s266 + $0x2c] sm:$0xf]
        %v622 = vld [vmem:[%s266 + $0x30] sm:$0xf]
        %v623 = vld [vmem:[%s266 + $0x34] sm:$0xf]
        %v624 = vld [vmem:[%s266 + $0x38] sm:$0xf]
        %v625 = vld [vmem:[%s266 + $0x3c] sm:$0xf]
        %v626 = vld [vmem:[%s269] sm:$0x1]
        %v628 = vperm.slane %v626, 0
        %v662 = vunpack.c.l.b16 %v578
        %v663 = vunpack.c.l.b16 %v579
        %v664 = vunpack.c.l.b16 %v580
        %v665 = vunpack.c.l.b16 %v581
        %v666 = vunpack.c.l.b16 %v582
        %v667 = vunpack.c.l.b16 %v583
        %v668 = vunpack.c.l.b16 %v584
        %v669 = vunpack.c.l.b16 %v585
        %v670 = vunpack.c.l.b16 %v586
        %v671 = vunpack.c.l.b16 %v587
        %v672 = vunpack.c.l.b16 %v588
        %v673 = vunpack.c.l.b16 %v589
        %v674 = vunpack.c.l.b16 %v590
        %v675 = vunpack.c.l.b16 %v591
        %v676 = vunpack.c.l.b16 %v592
        %v677 = vunpack.c.l.b16 %v593
        %v678 = vunpack.c.l.b16 %v594
        %v679 = vunpack.c.l.b16 %v595
        %v680 = vunpack.c.l.b16 %v596
        %v681 = vunpack.c.l.b16 %v597
        %v682 = vunpack.c.l.b16 %v598
        %v683 = vunpack.c.l.b16 %v599
        %v684 = vunpack.c.l.b16 %v600
        %v685 = vunpack.c.l.b16 %v601
        %v686 = vunpack.c.l.b16 %v602
        %v687 = vunpack.c.l.b16 %v603
        %v688 = vunpack.c.l.b16 %v604
        %v689 = vunpack.c.l.b16 %v605
        %v690 = vunpack.c.l.b16 %v606
        %v691 = vunpack.c.l.b16 %v607
        %v692 = vunpack.c.l.b16 %v608
        %v693 = vunpack.c.l.b16 %v609
        %v694 = vpack.c.b16 %v663, %v662
        %v695 = vpack.c.b16 %v665, %v664
        %v696 = vpack.c.b16 %v667, %v666
        %v697 = vpack.c.b16 %v669, %v668
        %v698 = vpack.c.b16 %v671, %v670
        %v699 = vpack.c.b16 %v673, %v672
        %v700 = vpack.c.b16 %v675, %v674
        %v701 = vpack.c.b16 %v677, %v676
        %v702 = vpack.c.b16 %v679, %v678
        %v703 = vpack.c.b16 %v681, %v680
        %v704 = vpack.c.b16 %v683, %v682
        %v705 = vpack.c.b16 %v685, %v684
        %v706 = vpack.c.b16 %v687, %v686
        %v707 = vpack.c.b16 %v689, %v688
        %v708 = vpack.c.b16 %v691, %v690
        %v709 = vpack.c.b16 %v693, %v692
        %v742 = vunpack.c.l.b16 %v610
        %v743 = vunpack.c.l.b16 %v611
        %v744 = vunpack.c.l.b16 %v612
        %v745 = vunpack.c.l.b16 %v613
        %v746 = vunpack.c.l.b16 %v614
        %v747 = vunpack.c.l.b16 %v615
        %v748 = vunpack.c.l.b16 %v616
        %v749 = vunpack.c.l.b16 %v617
        %v750 = vunpack.c.l.b16 %v618
        %v751 = vunpack.c.l.b16 %v619
        %v752 = vunpack.c.l.b16 %v620
        %v753 = vunpack.c.l.b16 %v621
        %v754 = vunpack.c.l.b16 %v622
        %v755 = vunpack.c.l.b16 %v623
        %v756 = vunpack.c.l.b16 %v624
        %v757 = vunpack.c.l.b16 %v625
        %v758 = vpack.c.b16 %v743, %v742
        %v759 = vpack.c.b16 %v745, %v744
        %v760 = vpack.c.b16 %v747, %v746
        %v761 = vpack.c.b16 %v749, %v748
        %v762 = vpack.c.b16 %v751, %v750
        %v763 = vpack.c.b16 %v753, %v752
        %v764 = vpack.c.b16 %v755, %v754
        %v765 = vpack.c.b16 %v757, %v756
        %774 = vmatpush.bf16.msra.mxu0 %v765
        %775 = vmatpush.bf16.msra.mxu0 %v764
        %776 = vmatpush.bf16.msra.mxu0 %v763
        %777 = vmatpush.bf16.msra.mxu0 %v762
        %778 = vmatpush.bf16.msra.mxu0 %v761
        %779 = vmatpush.bf16.msra.mxu0 %v760
        %780 = vmatpush.bf16.msra.mxu0 %v759
        %781 = vmatpush.bf16.msra.mxu0 %v758
        %782 = vmatmul.bf16.gmra.mxu0 %v694
        %v783 = vpop.f32.mrf.mxu0
        %v784 = vadd.f32 %v628, %v783
        %v785 = vpop.f32.mrf.mxu0
        %v786 = vadd.f32 %v628, %v785
        %787 = vmatmul.bf16.gmra.mxu0 %v695
        %v788 = vpop.f32.mrf.mxu0
        %v789 = vadd.f32 %v628, %v788
        %v790 = vpop.f32.mrf.mxu0
        %v791 = vadd.f32 %v628, %v790
        %792 = vmatmul.bf16.gmra.mxu0 %v696
        %v793 = vpop.f32.mrf.mxu0
        %v794 = vadd.f32 %v628, %v793
        %v795 = vpop.f32.mrf.mxu0
        %v796 = vadd.f32 %v628, %v795
        %797 = vmatmul.bf16.gmra.mxu0 %v697
        %v798 = vpop.f32.mrf.mxu0
        %v799 = vadd.f32 %v628, %v798
        %v800 = vpop.f32.mrf.mxu0
        %v801 = vadd.f32 %v628, %v800
        %802 = vmatmul.bf16.gmra.mxu0 %v698
        %v803 = vpop.f32.mrf.mxu0
        %v804 = vadd.f32 %v628, %v803
        %v805 = vpop.f32.mrf.mxu0
        %v806 = vadd.f32 %v628, %v805
        %807 = vmatmul.bf16.gmra.mxu0 %v699
        %v808 = vpop.f32.mrf.mxu0
        %v809 = vadd.f32 %v628, %v808
        %v810 = vpop.f32.mrf.mxu0
        %v811 = vadd.f32 %v628, %v810
        %812 = vmatmul.bf16.gmra.mxu0 %v700
        %v813 = vpop.f32.mrf.mxu0
        %v814 = vadd.f32 %v628, %v813
        %v815 = vpop.f32.mrf.mxu0
        %v816 = vadd.f32 %v628, %v815
        %817 = vmatmul.bf16.gmra.mxu0 %v701
        %v818 = vpop.f32.mrf.mxu0
        %v819 = vadd.f32 %v628, %v818
        %v820 = vpop.f32.mrf.mxu0
        %v821 = vadd.f32 %v628, %v820
        %822 = vmatmul.bf16.gmra.mxu0 %v702
        %v823 = vpop.f32.mrf.mxu0
        %v824 = vadd.f32 %v628, %v823
        %v825 = vpop.f32.mrf.mxu0
        %v826 = vadd.f32 %v628, %v825
        %827 = vmatmul.bf16.gmra.mxu0 %v703
        %v828 = vpop.f32.mrf.mxu0
        %v829 = vadd.f32 %v628, %v828
        %v830 = vpop.f32.mrf.mxu0
        %v831 = vadd.f32 %v628, %v830
        %832 = vmatmul.bf16.gmra.mxu0 %v704
        %v833 = vpop.f32.mrf.mxu0
        %v834 = vadd.f32 %v628, %v833
        %v835 = vpop.f32.mrf.mxu0
        %v836 = vadd.f32 %v628, %v835
        %837 = vmatmul.bf16.gmra.mxu0 %v705
        %v838 = vpop.f32.mrf.mxu0
        %v839 = vadd.f32 %v628, %v838
        %v840 = vpop.f32.mrf.mxu0
        %v841 = vadd.f32 %v628, %v840
        %842 = vmatmul.bf16.gmra.mxu0 %v706
        %v843 = vpop.f32.mrf.mxu0
        %v844 = vadd.f32 %v628, %v843
        %v845 = vpop.f32.mrf.mxu0
        %v846 = vadd.f32 %v628, %v845
        %847 = vmatmul.bf16.gmra.mxu0 %v707
        %v848 = vpop.f32.mrf.mxu0
        %v849 = vadd.f32 %v628, %v848
        %v850 = vpop.f32.mrf.mxu0
        %v851 = vadd.f32 %v628, %v850
        %852 = vmatmul.bf16.gmra.mxu0 %v708
        %v853 = vpop.f32.mrf.mxu0
        %v854 = vadd.f32 %v628, %v853
        %v855 = vpop.f32.mrf.mxu0
        %v856 = vadd.f32 %v628, %v855
        %857 = vmatmul.bf16.gmra.mxu0 %v709
        %v858 = vpop.f32.mrf.mxu0
        %v859 = vadd.f32 %v628, %v858
        %v860 = vpop.f32.mrf.mxu0
        %v861 = vadd.f32 %v628, %v860
        %862 = vdwg.mxu0
        %863 = vst [vmem:[%s256] sm:$0xff] %v784
        %864 = vst [vmem:[%s256 + $0x8] sm:$0xff] %v786
        %865 = vst [vmem:[%s256 + $0x10] sm:$0xff] %v789
        %866 = vst [vmem:[%s256 + $0x18] sm:$0xff] %v791
        %867 = vst [vmem:[%s256 + $0x20] sm:$0xff] %v794
        %868 = vst [vmem:[%s256 + $0x28] sm:$0xff] %v796
        %869 = vst [vmem:[%s256 + $0x30] sm:$0xff] %v799
        %870 = vst [vmem:[%s256 + $0x38] sm:$0xff] %v801
        %871 = vst [vmem:[%s256 + $0x40] sm:$0xff] %v804
        %872 = vst [vmem:[%s256 + $0x48] sm:$0xff] %v806
        %873 = vst [vmem:[%s256 + $0x50] sm:$0xff] %v809
        %874 = vst [vmem:[%s256 + $0x58] sm:$0xff] %v811
        %875 = vst [vmem:[%s256 + $0x60] sm:$0xff] %v814
        %876 = vst [vmem:[%s256 + $0x68] sm:$0xff] %v816
        %877 = vst [vmem:[%s256 + $0x70] sm:$0xff] %v819
        %878 = vst [vmem:[%s256 + $0x78] sm:$0xff] %v821
        %879 = vst [vmem:[%s256 + $0x80] sm:$0xff] %v824
        %880 = vst [vmem:[%s256 + $0x88] sm:$0xff] %v826
        %881 = vst [vmem:[%s256 + $0x90] sm:$0xff] %v829
        %882 = vst [vmem:[%s256 + $0x98] sm:$0xff] %v831
        %883 = vst [vmem:[%s256 + $0xa0] sm:$0xff] %v834
        %884 = vst [vmem:[%s256 + $0xa8] sm:$0xff] %v836
        %885 = vst [vmem:[%s256 + $0xb0] sm:$0xff] %v839
        %886 = vst [vmem:[%s256 + $0xb8] sm:$0xff] %v841
        %887 = vst [vmem:[%s256 + $0xc0] sm:$0xff] %v844
        %888 = vst [vmem:[%s256 + $0xc8] sm:$0xff] %v846
        %889 = vst [vmem:[%s256 + $0xd0] sm:$0xff] %v849
        %890 = vst [vmem:[%s256 + $0xd8] sm:$0xff] %v851
        %891 = vst [vmem:[%s256 + $0xe0] sm:$0xff] %v854
        %892 = vst [vmem:[%s256 + $0xe8] sm:$0xff] %v856
        %893 = vst [vmem:[%s256 + $0xf0] sm:$0xff] %v859
        %894 = vst [vmem:[%s256 + $0xf8] sm:$0xff] %v861
        %s895 = sand.u32 %s161, 1
        %s896 = scalar_lea.sflag [#allocation4], %s895
        %s897 = sand.u32 %s161, 1
        %s898 = smul.addr %s897, 256
        %s899 = scalar_lea.vmem [#allocation3], %s898
        // Predicated region
        $region45: #{tpu_custom_call.1} parent=39 // pred_check
          %p900 = pneg %p171
        $region46: #{tpu_custom_call.1} parent=39 // pred_check_branch
          %902 = sbr.rel (%p900) target = $region48
        $region47: #{tpu_custom_call.1} parent=39 // pred_region
          %s903 = smul.u32 32, %s23
          %905 = vsyncadd %s896, 0
          %s906 = sadd.s32 %s24, %s903
          %s907 = smul.addr %s906, 8
          %s908 = scalar_lea.hbm %s5, %s907
          %s909 = sshll.u32 %s899, 4
          %s910 = int_to_ptr.vmem [resolvable:$true] %s909
          %s911 = sshll.u32 %s908, 4
          %s912 = int_to_ptr.hbm [resolvable:$true] %s911
          %917 = dma.vmem_to_hbm [thread:$0]  %s910, 4096, %s912, %s896, 128, 128, 8
        $region48: #{tpu_custom_call.1} parent=39 // pred_fallthru
          _
      $region40: #{tpu_custom_call.1} parent=5 // pred_fallthru
        _
      %p918 = scmp.le.s32.totalorder 2, %s14
      // Predicated region
      $region49: #{tpu_custom_call.1} parent=5 // pred_check
        %p919 = pneg %p918
      $region50: #{tpu_custom_call.1} parent=5 // pred_check_branch
        %921 = sbr.rel (%p919) target = $region52
      $region51: #{tpu_custom_call.1} parent=5 // pred_region
        %s922 = ssub.s32 %s14, 2
        // Predicated region
        $region53: #{tpu_custom_call.1} parent=51 // pred_check
          %p923 = pneg %p177
        $region54: #{tpu_custom_call.1} parent=51 // pred_check_branch
          %925 = sbr.rel (%p923) target = $region56
        $region55: #{tpu_custom_call.1} parent=51 // pred_region
          %s926 = sand.u32 %s162, 1
          %s927 = scalar_lea.sflag [#allocation4], %s926
          %s928 = sand.u32 %s162, 1
          %s929 = smul.addr %s928, 256
          %s930 = scalar_lea.vmem [#allocation3], %s929
          %932 = dma.done %s927, 4096
        $region56: #{tpu_custom_call.1} parent=51 // pred_fallthru
          _
      $region52: #{tpu_custom_call.1} parent=5 // pred_fallthru
        _
    $region6: #{tpu_custom_call.1} parent=1 // loop_footer
      %s18 = sadd.s32 1, %s14
    $region7: #{tpu_custom_call.1} parent=1 // loop_footer_branch
      %13 = sbr.rel target = $region3
    $region8: #{tpu_custom_call.1} parent=1 // loop_exit
      _
    %933 = vsyncpa [#allocation4], 1
    %s934 = scalar_lea.sflag [#allocation4], 1
    %935 = vsyncpa %s934, 1

</llo_original>
